<compile_context>
chip_gen: v6e
topology: v6e:2x2x1
jax: 0.10.0
libtpu: 0.0.40
codegen_flags: <defaults>
</compile_context>

<pallas_src>
import jax
import jax.numpy as jnp
from jax.experimental import pallas as pl
from jax.experimental.pallas import tpu as pltpu

B, C, H, W = 2, 4, 16, 16
D = C * H * W        # 1024 flattened input features per image
F = 128              # backbone_output_shape (per-branch feature dim)
HID = 256            # classifier hidden width: Linear(2*F, 256)


def siamese_kernel(xy_ref, wb_ref, bb_ref, w1a_ref, w1b_ref, b1_ref,
                   w2_ref, b2_ref, o_ref):
    # Shared-weight backbone on the stacked (2B, D) input: one MXU pass instead
    # of two, one bias broadcast + ReLU (f32 accumulation).
    f = jnp.dot(xy_ref[...], wb_ref[...],
                preferred_element_type=jnp.float32) + bb_ref[...]
    f = jnp.maximum(f, 0.0)
    fx = f[:B, :].astype(jnp.bfloat16)   # branch-x features
    fy = f[B:, :].astype(jnp.bfloat16)   # branch-y features

    # union_method == 'cat' + Linear(2F, HID), with no materialized concat:
    #   [fx | fy] @ w1 == fx @ w1[:F] + fy @ w1[F:]
    h = (jnp.dot(fx, w1a_ref[...], preferred_element_type=jnp.float32)
         + jnp.dot(fy, w1b_ref[...], preferred_element_type=jnp.float32)
         + b1_ref[...])
    h = jnp.maximum(h, 0.0)

    # Final Linear(HID, 1): N=1 matmul wastes the MXU -> VPU mul + lane reduce.
    logits = jnp.sum(h * w2_ref[...], axis=-1, keepdims=True) + b2_ref[...]
    o_ref[...] = jax.nn.sigmoid(logits)


def siamese_forward(x, y, params):
    wb, bb, w1, b1, w2, b2 = params
    # Stack both branches so the shared-weight backbone is a single matmul.
    xy = jnp.concatenate([x.reshape(B, D), y.reshape(B, D)],
                         axis=0).astype(jnp.bfloat16)                  # (2B, D)
    # bf16 weights halve the dominant weight DMA; biases stay f32.
    wb_h = wb.astype(jnp.bfloat16)                                      # (D, F)
    w1a = w1[:F].astype(jnp.bfloat16)                                   # (F, HID)
    w1b = w1[F:].astype(jnp.bfloat16)                                   # (F, HID)
    w2_row = w2.reshape(1, HID).astype(jnp.float32)                     # (1, HID)

    args = (xy, wb_h, bb, w1a, w1b, b1, w2_row, b2)

    def full_spec(shape):
        n = len(shape)
        return pl.BlockSpec(shape, lambda *_, n=n: (0,) * n)

    return pl.pallas_call(
        siamese_kernel,
        out_shape=jax.ShapeDtypeStruct((B, 1), jnp.float32),
        grid=(1,),
        in_specs=[full_spec(a.shape) for a in args],
        out_specs=full_spec((B, 1)),
        compiler_params=pltpu.CompilerParams(
            dimension_semantics=("arbitrary",)),
    )(*args)


def reference_forward(x, y, params):
    # Pure-f32 JAX reference matching the PyTorch forward semantics.
    wb, bb, w1, b1, w2, b2 = params
    fx = jnp.maximum(x.reshape(B, D) @ wb + bb, 0.0)
    fy = jnp.maximum(y.reshape(B, D) @ wb + bb, 0.0)
    feat = jnp.concatenate([fx, fy], axis=1)                            # 'cat'
    h = jnp.maximum(feat @ w1 + b1, 0.0)
    return jax.nn.sigmoid(h @ w2 + b2)


def init_params(key):
    k = jax.random.split(key, 6)
    # Weights stored as (in, out); PyTorch Linear computes x @ W.T + b with W (out, in).
    wb = jax.random.normal(k[0], (D, F), jnp.float32) * (1.0 / jnp.sqrt(D))
    bb = jax.random.normal(k[1], (1, F), jnp.float32) * 0.01
    w1 = jax.random.normal(k[2], (2 * F, HID), jnp.float32) * (1.0 / jnp.sqrt(2 * F))
    b1 = jax.random.normal(k[3], (1, HID), jnp.float32) * 0.01
    w2 = jax.random.normal(k[4], (HID, 1), jnp.float32) * (1.0 / jnp.sqrt(HID))
    b2 = jax.random.normal(k[5], (1, 1), jnp.float32) * 0.01
    return wb, bb, w1, b1, w2, b2


if __name__ == "__main__":
    key = jax.random.PRNGKey(0)
    kx, ky, kp = jax.random.split(key, 3)
    x = jax.random.normal(kx, (B, C, H, W), jnp.float32)
    y = jax.random.normal(ky, (B, C, H, W), jnp.float32)
    params = init_params(kp)

    out = siamese_forward(x, y, params)
    out = jax.block_until_ready(out)

    ref = reference_forward(x, y, params)
    assert out.shape == (B, 1)
    # bf16 weights/activations on the matmul path => looser tolerance vs f32 ref.
    assert jnp.allclose(out, ref, atol=2e-2, rtol=2e-2), "mismatch vs JAX reference"
    print("KERNEL_OK")
</pallas_src>

<mosaic_0001>
module attributes {stable_mosaic.version = 11 : i64} {
  func.func @siamese_kernel(%arg0: i32, %arg1: memref<4x1024xbf16, #tpu.memory_space<vmem>>, %arg2: memref<1024x128xbf16, #tpu.memory_space<vmem>>, %arg3: memref<1x128xf32, #tpu.memory_space<vmem>>, %arg4: memref<128x256xbf16, #tpu.memory_space<vmem>>, %arg5: memref<128x256xbf16, #tpu.memory_space<vmem>>, %arg6: memref<1x256xf32, #tpu.memory_space<vmem>>, %arg7: memref<1x256xf32, #tpu.memory_space<vmem>>, %arg8: memref<1x1xf32, #tpu.memory_space<vmem>>, %arg9: memref<2x1xf32, #tpu.memory_space<vmem>>) attributes {dimension_semantics = [#tpu.dimension_semantics<arbitrary>], iteration_bounds = array<i64: 1>, scalar_prefetch = 0 : i64, scratch_operands = 0 : i64, tpu.core_type = #tpu.core_type<tc>, window_params = [{pipeline_mode = #tpu.pipeline_mode<synchronous>, transform_indices = @transform_0, window_bounds = array<i64: 4, 1024>}, {pipeline_mode = #tpu.pipeline_mode<synchronous>, transform_indices = @transform_1, window_bounds = array<i64: 1024, 128>}, {pipeline_mode = #tpu.pipeline_mode<synchronous>, transform_indices = @transform_2, window_bounds = array<i64: 1, 128>}, {pipeline_mode = #tpu.pipeline_mode<synchronous>, transform_indices = @transform_3, window_bounds = array<i64: 128, 256>}, {pipeline_mode = #tpu.pipeline_mode<synchronous>, transform_indices = @transform_4, window_bounds = array<i64: 128, 256>}, {pipeline_mode = #tpu.pipeline_mode<synchronous>, transform_indices = @transform_5, window_bounds = array<i64: 1, 256>}, {pipeline_mode = #tpu.pipeline_mode<synchronous>, transform_indices = @transform_6, window_bounds = array<i64: 1, 256>}, {pipeline_mode = #tpu.pipeline_mode<synchronous>, transform_indices = @transform_7, window_bounds = array<i64: 1, 1>}, {pipeline_mode = #tpu.pipeline_mode<synchronous>, transform_indices = @transform_8, window_bounds = array<i64: 2, 1>}]} {
    %c0 = arith.constant 0 : index
    %c0_0 = arith.constant 0 : index
    %0 = vector.load %arg1[%c0, %c0_0] : memref<4x1024xbf16, #tpu.memory_space<vmem>>, vector<4x1024xbf16>
    %c0_1 = arith.constant 0 : index
    %c0_2 = arith.constant 0 : index
    %1 = vector.load %arg2[%c0_1, %c0_2] : memref<1024x128xbf16, #tpu.memory_space<vmem>>, vector<1024x128xbf16>
    %cst = arith.constant dense<0.000000e+00> : vector<4x128xf32>
    %2 = tpu.matmul %0, %1, %cst {dimension_numbers = #tpu.dot_dimension_numbers<[1], [0], [0], [1], [0, 0, 1, 1], [], []>} : vector<4x1024xbf16>, vector<1024x128xbf16>, vector<4x128xf32> -> vector<4x128xf32>
    %c0_3 = arith.constant 0 : index
    %c0_4 = arith.constant 0 : index
    %3 = vector.load %arg3[%c0_3, %c0_4] : memref<1x128xf32, #tpu.memory_space<vmem>>, vector<1x128xf32>
    %4 = vector.broadcast %3 : vector<1x128xf32> to vector<4x128xf32>
    %5 = arith.addf %2, %4 : vector<4x128xf32>
    %cst_5 = arith.constant 0.000000e+00 : f32
    %6 = vector.broadcast %cst_5 : f32 to vector<4x128xf32>
    %7 = arith.maximumf %5, %6 : vector<4x128xf32>
    %8 = vector.extract_strided_slice %7 {offsets = [0, 0], sizes = [2, 128], strides = [1, 1]} : vector<4x128xf32> to vector<2x128xf32>
    %9 = arith.truncf %8 : vector<2x128xf32> to vector<2x128xbf16>
    %10 = vector.extract_strided_slice %7 {offsets = [2, 0], sizes = [2, 128], strides = [1, 1]} : vector<4x128xf32> to vector<2x128xf32>
    %11 = arith.truncf %10 : vector<2x128xf32> to vector<2x128xbf16>
    %c0_6 = arith.constant 0 : index
    %c0_7 = arith.constant 0 : index
    %12 = vector.load %arg4[%c0_6, %c0_7] : memref<128x256xbf16, #tpu.memory_space<vmem>>, vector<128x256xbf16>
    %cst_8 = arith.constant dense<0.000000e+00> : vector<2x256xf32>
    %13 = tpu.matmul %9, %12, %cst_8 {dimension_numbers = #tpu.dot_dimension_numbers<[1], [0], [0], [1], [0, 0, 1, 1], [], []>} : vector<2x128xbf16>, vector<128x256xbf16>, vector<2x256xf32> -> vector<2x256xf32>
    %c0_9 = arith.constant 0 : index
    %c0_10 = arith.constant 0 : index
    %14 = vector.load %arg5[%c0_9, %c0_10] : memref<128x256xbf16, #tpu.memory_space<vmem>>, vector<128x256xbf16>
    %cst_11 = arith.constant dense<0.000000e+00> : vector<2x256xf32>
    %15 = tpu.matmul %11, %14, %cst_11 {dimension_numbers = #tpu.dot_dimension_numbers<[1], [0], [0], [1], [0, 0, 1, 1], [], []>} : vector<2x128xbf16>, vector<128x256xbf16>, vector<2x256xf32> -> vector<2x256xf32>
    %16 = arith.addf %13, %15 : vector<2x256xf32>
    %c0_12 = arith.constant 0 : index
    %c0_13 = arith.constant 0 : index
    %17 = vector.load %arg6[%c0_12, %c0_13] : memref<1x256xf32, #tpu.memory_space<vmem>>, vector<1x256xf32>
    %18 = vector.broadcast %17 : vector<1x256xf32> to vector<2x256xf32>
    %19 = arith.addf %16, %18 : vector<2x256xf32>
    %cst_14 = arith.constant 0.000000e+00 : f32
    %20 = vector.broadcast %cst_14 : f32 to vector<2x256xf32>
    %21 = arith.maximumf %19, %20 : vector<2x256xf32>
    %c0_15 = arith.constant 0 : index
    %c0_16 = arith.constant 0 : index
    %22 = vector.load %arg7[%c0_15, %c0_16] : memref<1x256xf32, #tpu.memory_space<vmem>>, vector<1x256xf32>
    %23 = vector.broadcast %22 : vector<1x256xf32> to vector<2x256xf32>
    %24 = arith.mulf %21, %23 : vector<2x256xf32>
    %cst_17 = arith.constant dense<0.000000e+00> : vector<2xf32>
    %25 = vector.multi_reduction <add>, %24, %cst_17 [1] : vector<2x256xf32> to vector<2xf32>
    %26 = vector.shape_cast %25 : vector<2xf32> to vector<2x1xf32>
    %c0_18 = arith.constant 0 : index
    %c0_19 = arith.constant 0 : index
    %27 = vector.load %arg8[%c0_18, %c0_19] : memref<1x1xf32, #tpu.memory_space<vmem>>, vector<1x1xf32>
    %28 = vector.broadcast %27 : vector<1x1xf32> to vector<2x1xf32>
    %29 = arith.addf %26, %28 : vector<2x1xf32>
    %30 = arith.negf %29 : vector<2x1xf32>
    %31 = math.exp %30 : vector<2x1xf32>
    %cst_20 = arith.constant 1.000000e+00 : f32
    %32 = vector.broadcast %cst_20 : f32 to vector<2x1xf32>
    %33 = arith.addf %32, %31 : vector<2x1xf32>
    %34 = arith.divf %32, %33 : vector<2x1xf32>
    %c0_21 = arith.constant 0 : index
    %c0_22 = arith.constant 0 : index
    %35 = vector.load %arg9[%c0_21, %c0_22] : memref<2x1xf32, #tpu.memory_space<vmem>>, vector<2x1xf32>
    tpu.vector_store %arg9[%c0_21, %c0_22], %34 {strides = array<i32>} : memref<2x1xf32, #tpu.memory_space<vmem>>, vector<2x1xf32>,
    return
  }
  func.func @transform_0(%arg0: i32) -> (i32, i32) {
    %c0_i32 = arith.constant 0 : i32
    %c0_i32_0 = arith.constant 0 : i32
    %c0_i32_1 = arith.constant 0 : i32
    return %c0_i32, %c0_i32_0 : i32, i32
  }
  func.func @transform_1(%arg0: i32) -> (i32, i32) {
    %c0_i32 = arith.constant 0 : i32
    %c0_i32_0 = arith.constant 0 : i32
    %c0_i32_1 = arith.constant 0 : i32
    return %c0_i32, %c0_i32_0 : i32, i32
  }
  func.func @transform_2(%arg0: i32) -> (i32, i32) {
    %c0_i32 = arith.constant 0 : i32
    %c0_i32_0 = arith.constant 0 : i32
    %c0_i32_1 = arith.constant 0 : i32
    return %c0_i32, %c0_i32_0 : i32, i32
  }
  func.func @transform_3(%arg0: i32) -> (i32, i32) {
    %c0_i32 = arith.constant 0 : i32
    %c0_i32_0 = arith.constant 0 : i32
    %c0_i32_1 = arith.constant 0 : i32
    return %c0_i32, %c0_i32_0 : i32, i32
  }
  func.func @transform_4(%arg0: i32) -> (i32, i32) {
    %c0_i32 = arith.constant 0 : i32
    %c0_i32_0 = arith.constant 0 : i32
    %c0_i32_1 = arith.constant 0 : i32
    return %c0_i32, %c0_i32_0 : i32, i32
  }
  func.func @transform_5(%arg0: i32) -> (i32, i32) {
    %c0_i32 = arith.constant 0 : i32
    %c0_i32_0 = arith.constant 0 : i32
    %c0_i32_1 = arith.constant 0 : i32
    return %c0_i32, %c0_i32_0 : i32, i32
  }
  func.func @transform_6(%arg0: i32) -> (i32, i32) {
    %c0_i32 = arith.constant 0 : i32
    %c0_i32_0 = arith.constant 0 : i32
    %c0_i32_1 = arith.constant 0 : i32
    return %c0_i32, %c0_i32_0 : i32, i32
  }
  func.func @transform_7(%arg0: i32) -> (i32, i32) {
    %c0_i32 = arith.constant 0 : i32
    %c0_i32_0 = arith.constant 0 : i32
    %c0_i32_1 = arith.constant 0 : i32
    return %c0_i32, %c0_i32_0 : i32, i32
  }
  func.func @transform_8(%arg0: i32) -> (i32, i32) {
    %c0_i32 = arith.constant 0 : i32
    %c0_i32_0 = arith.constant 0 : i32
    %c0_i32_1 = arith.constant 0 : i32
    return %c0_i32, %c0_i32_0 : i32, i32
  }
}

</mosaic_0001>

<llo_original>
// kernel: tpu_custom_call.1
$region0: #{tpu_custom_call.1}
  #allocation0 [shape = 'u32[]', space=smem, size = 0x4, offset = 0x4, fixed_abs, tag = 'smem constant byte address 0x4 - core index']
  #allocation1 [shape = 'u32[144,128]{1,0:T(1,128)}', space=vmem, size = 0x12000, scoped, tag = 'internal scratch']
  #allocation2 [shape = 'f32[1,1]{1,0:T(1,128)S(1)}', space=vmem, size = 0x200, scoped, tag = 'scoped memory for tpu_custom_call.1']
  %s0 = inlined_call_operand.hbm [shape: bf16[4,1024], index: 0, kind: input, shape index: {}]
  %s1 = inlined_call_operand.hbm [shape: bf16[1024,128], index: 1, kind: input, shape index: {}]
  %s2 = inlined_call_operand.vmem [shape: f32[1,128], index: 2, kind: input, shape index: {}]
  %s3 = inlined_call_operand.hbm [shape: bf16[128,256], index: 3, kind: input, shape index: {}]
  %s4 = inlined_call_operand.hbm [shape: bf16[128,256], index: 4, kind: input, shape index: {}]
  %s5 = inlined_call_operand.vmem [shape: f32[1,256], index: 5, kind: input, shape index: {}]
  %s6 = inlined_call_operand.vmem [shape: f32[1,256], index: 6, kind: input, shape index: {}]
  %s7 = inlined_call_operand.<no memory space> [shape: f32[1,1], index: 7, kind: input, shape index: {}]
  %s8 = inlined_call_operand.vmem [shape: f32[2,1], index: 8, kind: output, shape index: {}]
  %s9 = sld [smem:[#allocation0]]
  $region58: #{tpu_custom_call.1} parent=0
    _
  %s11 = ssub.s32 1, %s9
  %s12 = scalar_select 0, %s11, %s9
  %v13 = vstv %s7
  %14 = vst [vmem:[#allocation2] sm:$0x1] %v13
  $region1: #{tpu_custom_call.1} parent=0
    #allocation3 [shape = 'u8[8192]{0}', space=vmem, size = 0x2000, scoped, tag = 'input window, operand 0, single buffered']
    #allocation4 [shape = 's32[1]{0}', space=sflag, size = 0x4, scoped, tag = 'scoped memory for tpu_custom_call.1']
    #allocation5 [shape = 'u8[262144]{0}', space=vmem, size = 0x40000, scoped, tag = 'input window, operand 1, single buffered']
    #allocation6 [shape = 's32[1]{0}', space=sflag, size = 0x4, scoped, tag = 'scoped memory for tpu_custom_call.1']
    #allocation7 [shape = 'u8[65536]{0}', space=vmem, size = 0x10000, scoped, tag = 'input window, operand 3, single buffered']
    #allocation8 [shape = 'u8[65536]{0}', space=vmem, size = 0x10000, scoped, tag = 'input window, operand 4, single buffered']
    #allocation9 [shape = 's32[1]{0}', space=sflag, size = 0x4, scoped, tag = 'scoped memory for tpu_custom_call.1']
    %15 = vsyncpa [#allocation4], 0
    %16 = vsyncpa [#allocation6], 0
    %17 = vsyncpa [#allocation9], 0
    // Predicated region
    $region2: #{tpu_custom_call.1} parent=1 // pred_check
      _
    $region3: #{tpu_custom_call.1} parent=1 // pred_check_branch
      %19 = sbr.rel (0) target = $region5
    $region4: #{tpu_custom_call.1} parent=1 // pred_region
      %s21 = ssub.s32 256, 256
      %22 = vsyncadd [#allocation4], %s21
      %s24 = sshll.u32 [#allocation3], 4
      %s25 = int_to_ptr.vmem [resolvable:$true] %s24
      %27 = dma.hbm_to_vmem [thread:$0]  %s0, 256, %s25, [#allocation4]
    $region5: #{tpu_custom_call.1} parent=1 // pred_fallthru
      _
    // Predicated region
    $region6: #{tpu_custom_call.1} parent=1 // pred_check
      _
    $region7: #{tpu_custom_call.1} parent=1 // pred_check_branch
      %29 = sbr.rel (0) target = $region9
    $region8: #{tpu_custom_call.1} parent=1 // pred_region
      %s31 = ssub.s32 8192, 8192
      %32 = vsyncadd [#allocation6], %s31
      %s33 = sshll.u32 [#allocation5], 4
      %s34 = int_to_ptr.vmem [resolvable:$true] %s33
      %39 = dma.hbm_to_vmem [thread:$0]  %s1, 8192, %s34, [#allocation6], 64, 64, 4
    $region9: #{tpu_custom_call.1} parent=1 // pred_fallthru
      _
    // Predicated region
    $region10: #{tpu_custom_call.1} parent=1 // pred_check
      _
    $region11: #{tpu_custom_call.1} parent=1 // pred_check_branch
      %41 = sbr.rel (0) target = $region13
    $region12: #{tpu_custom_call.1} parent=1 // pred_region
      _
    $region13: #{tpu_custom_call.1} parent=1 // pred_fallthru
      _
    // Predicated region
    $region14: #{tpu_custom_call.1} parent=1 // pred_check
      _
    $region15: #{tpu_custom_call.1} parent=1 // pred_check_branch
      %43 = sbr.rel (0) target = $region17
    $region16: #{tpu_custom_call.1} parent=1 // pred_region
      %s45 = ssub.s32 2048, 2048
      %46 = vsyncadd [#allocation6], %s45
      %s47 = sshll.u32 [#allocation7], 4
      %s48 = int_to_ptr.vmem [resolvable:$true] %s47
      %53 = dma.hbm_to_vmem [thread:$0]  %s3, 2048, %s48, [#allocation6], 128, 128, 8
    $region17: #{tpu_custom_call.1} parent=1 // pred_fallthru
      _
    // Predicated region
    $region18: #{tpu_custom_call.1} parent=1 // pred_check
      _
    $region19: #{tpu_custom_call.1} parent=1 // pred_check_branch
      %55 = sbr.rel (0) target = $region21
    $region20: #{tpu_custom_call.1} parent=1 // pred_region
      %s57 = ssub.s32 2048, 2048
      %58 = vsyncadd [#allocation9], %s57
      %s59 = sshll.u32 [#allocation8], 4
      %s60 = int_to_ptr.vmem [resolvable:$true] %s59
      %65 = dma.hbm_to_vmem [thread:$0]  %s4, 2048, %s60, [#allocation9], 128, 128, 8
    $region21: #{tpu_custom_call.1} parent=1 // pred_fallthru
      _
    // Predicated region
    $region22: #{tpu_custom_call.1} parent=1 // pred_check
      _
    $region23: #{tpu_custom_call.1} parent=1 // pred_check_branch
      %67 = sbr.rel (0) target = $region25
    $region24: #{tpu_custom_call.1} parent=1 // pred_region
      _
    $region25: #{tpu_custom_call.1} parent=1 // pred_fallthru
      _
    // Predicated region
    $region26: #{tpu_custom_call.1} parent=1 // pred_check
      _
    $region27: #{tpu_custom_call.1} parent=1 // pred_check_branch
      %69 = sbr.rel (0) target = $region29
    $region28: #{tpu_custom_call.1} parent=1 // pred_region
      _
    $region29: #{tpu_custom_call.1} parent=1 // pred_fallthru
      _
    // Predicated region
    $region30: #{tpu_custom_call.1} parent=1 // pred_check
      _
    $region31: #{tpu_custom_call.1} parent=1 // pred_check_branch
      %71 = sbr.rel (0) target = $region33
    $region32: #{tpu_custom_call.1} parent=1 // pred_region
      _
    $region33: #{tpu_custom_call.1} parent=1 // pred_fallthru
      _
    // Predicated region
    $region34: #{tpu_custom_call.1} parent=1 // pred_check
      _
    $region35: #{tpu_custom_call.1} parent=1 // pred_check_branch
      %73 = sbr.rel (0) target = $region37
    $region36: #{tpu_custom_call.1} parent=1 // pred_region
      %74 = dma.done [#allocation4], 256
    $region37: #{tpu_custom_call.1} parent=1 // pred_fallthru
      _
    // Predicated region
    $region38: #{tpu_custom_call.1} parent=1 // pred_check
      _
    $region39: #{tpu_custom_call.1} parent=1 // pred_check_branch
      %76 = sbr.rel (0) target = $region41
    $region40: #{tpu_custom_call.1} parent=1 // pred_region
      %77 = dma.done [#allocation6], 8192
    $region41: #{tpu_custom_call.1} parent=1 // pred_fallthru
      _
    // Predicated region
    $region42: #{tpu_custom_call.1} parent=1 // pred_check
      _
    $region43: #{tpu_custom_call.1} parent=1 // pred_check_branch
      %79 = sbr.rel (0) target = $region45
    $region44: #{tpu_custom_call.1} parent=1 // pred_region
      %80 = dma.done [#allocation6], 2048
    $region45: #{tpu_custom_call.1} parent=1 // pred_fallthru
      _
    // Predicated region
    $region46: #{tpu_custom_call.1} parent=1 // pred_check
      _
    $region47: #{tpu_custom_call.1} parent=1 // pred_check_branch
      %82 = sbr.rel (0) target = $region49
    $region48: #{tpu_custom_call.1} parent=1 // pred_region
      %83 = dma.done [#allocation9], 2048
    $region49: #{tpu_custom_call.1} parent=1 // pred_fallthru
      _
    %v85 = vld [vmem:[#allocation3] sm:$0xff]
    %v86 = vld [vmem:[#allocation3 + $0x8] sm:$0xff]
    %v87 = vld [vmem:[#allocation5] sm:$0xf]
    %v88 = vld [vmem:[#allocation5 + $0x4] sm:$0xf]
    %v89 = vld [vmem:[#allocation5 + $0x8] sm:$0xf]
    %v90 = vld [vmem:[#allocation5 + $0xc] sm:$0xf]
    %v91 = vld [vmem:[#allocation5 + $0x10] sm:$0xf]
    %v92 = vld [vmem:[#allocation5 + $0x14] sm:$0xf]
    %v93 = vld [vmem:[#allocation5 + $0x18] sm:$0xf]
    %v94 = vld [vmem:[#allocation5 + $0x1c] sm:$0xf]
    %v95 = vld [vmem:[#allocation5 + $0x20] sm:$0xf]
    %v96 = vld [vmem:[#allocation5 + $0x24] sm:$0xf]
    %v97 = vld [vmem:[#allocation5 + $0x28] sm:$0xf]
    %v98 = vld [vmem:[#allocation5 + $0x2c] sm:$0xf]
    %v99 = vld [vmem:[#allocation5 + $0x30] sm:$0xf]
    %v100 = vld [vmem:[#allocation5 + $0x34] sm:$0xf]
    %v101 = vld [vmem:[#allocation5 + $0x38] sm:$0xf]
    %v102 = vld [vmem:[#allocation5 + $0x3c] sm:$0xf]
    %v103 = vld [vmem:[#allocation5 + $0x40] sm:$0xf]
    %v104 = vld [vmem:[#allocation5 + $0x44] sm:$0xf]
    %v105 = vld [vmem:[#allocation5 + $0x48] sm:$0xf]
    %v106 = vld [vmem:[#allocation5 + $0x4c] sm:$0xf]
    %v107 = vld [vmem:[#allocation5 + $0x50] sm:$0xf]
    %v108 = vld [vmem:[#allocation5 + $0x54] sm:$0xf]
    %v109 = vld [vmem:[#allocation5 + $0x58] sm:$0xf]
    %v110 = vld [vmem:[#allocation5 + $0x5c] sm:$0xf]
    %v111 = vld [vmem:[#allocation5 + $0x60] sm:$0xf]
    %v112 = vld [vmem:[#allocation5 + $0x64] sm:$0xf]
    %v113 = vld [vmem:[#allocation5 + $0x68] sm:$0xf]
    %v114 = vld [vmem:[#allocation5 + $0x6c] sm:$0xf]
    %v115 = vld [vmem:[#allocation5 + $0x70] sm:$0xf]
    %v116 = vld [vmem:[#allocation5 + $0x74] sm:$0xf]
    %v117 = vld [vmem:[#allocation5 + $0x78] sm:$0xf]
    %v118 = vld [vmem:[#allocation5 + $0x7c] sm:$0xf]
    %v119 = vld [vmem:[#allocation5 + $0x80] sm:$0xf]
    %v120 = vld [vmem:[#allocation5 + $0x84] sm:$0xf]
    %v121 = vld [vmem:[#allocation5 + $0x88] sm:$0xf]
    %v122 = vld [vmem:[#allocation5 + $0x8c] sm:$0xf]
    %v123 = vld [vmem:[#allocation5 + $0x90] sm:$0xf]
    %v124 = vld [vmem:[#allocation5 + $0x94] sm:$0xf]
    %v125 = vld [vmem:[#allocation5 + $0x98] sm:$0xf]
    %v126 = vld [vmem:[#allocation5 + $0x9c] sm:$0xf]
    %v127 = vld [vmem:[#allocation5 + $0xa0] sm:$0xf]
    %v128 = vld [vmem:[#allocation5 + $0xa4] sm:$0xf]
    %v129 = vld [vmem:[#allocation5 + $0xa8] sm:$0xf]
    %v130 = vld [vmem:[#allocation5 + $0xac] sm:$0xf]
    %v131 = vld [vmem:[#allocation5 + $0xb0] sm:$0xf]
    %v132 = vld [vmem:[#allocation5 + $0xb4] sm:$0xf]
    %v133 = vld [vmem:[#allocation5 + $0xb8] sm:$0xf]
    %v134 = vld [vmem:[#allocation5 + $0xbc] sm:$0xf]
    %v135 = vld [vmem:[#allocation5 + $0xc0] sm:$0xf]
    %v136 = vld [vmem:[#allocation5 + $0xc4] sm:$0xf]
    %v137 = vld [vmem:[#allocation5 + $0xc8] sm:$0xf]
    %v138 = vld [vmem:[#allocation5 + $0xcc] sm:$0xf]
    %v139 = vld [vmem:[#allocation5 + $0xd0] sm:$0xf]
    %v140 = vld [vmem:[#allocation5 + $0xd4] sm:$0xf]
    %v141 = vld [vmem:[#allocation5 + $0xd8] sm:$0xf]
    %v142 = vld [vmem:[#allocation5 + $0xdc] sm:$0xf]
    %v143 = vld [vmem:[#allocation5 + $0xe0] sm:$0xf]
    %v144 = vld [vmem:[#allocation5 + $0xe4] sm:$0xf]
    %v145 = vld [vmem:[#allocation5 + $0xe8] sm:$0xf]
    %v146 = vld [vmem:[#allocation5 + $0xec] sm:$0xf]
    %v147 = vld [vmem:[#allocation5 + $0xf0] sm:$0xf]
    %v148 = vld [vmem:[#allocation5 + $0xf4] sm:$0xf]
    %v149 = vld [vmem:[#allocation5 + $0xf8] sm:$0xf]
    %v150 = vld [vmem:[#allocation5 + $0xfc] sm:$0xf]
    %v151 = vld [vmem:[#allocation5 + $0x100] sm:$0xf]
    %v152 = vld [vmem:[#allocation5 + $0x104] sm:$0xf]
    %v153 = vld [vmem:[#allocation5 + $0x108] sm:$0xf]
    %v154 = vld [vmem:[#allocation5 + $0x10c] sm:$0xf]
    %v155 = vld [vmem:[#allocation5 + $0x110] sm:$0xf]
    %v156 = vld [vmem:[#allocation5 + $0x114] sm:$0xf]
    %v157 = vld [vmem:[#allocation5 + $0x118] sm:$0xf]
    %v158 = vld [vmem:[#allocation5 + $0x11c] sm:$0xf]
    %v159 = vld [vmem:[#allocation5 + $0x120] sm:$0xf]
    %v160 = vld [vmem:[#allocation5 + $0x124] sm:$0xf]
    %v161 = vld [vmem:[#allocation5 + $0x128] sm:$0xf]
    %v162 = vld [vmem:[#allocation5 + $0x12c] sm:$0xf]
    %v163 = vld [vmem:[#allocation5 + $0x130] sm:$0xf]
    %v164 = vld [vmem:[#allocation5 + $0x134] sm:$0xf]
    %v165 = vld [vmem:[#allocation5 + $0x138] sm:$0xf]
    %v166 = vld [vmem:[#allocation5 + $0x13c] sm:$0xf]
    %v167 = vld [vmem:[#allocation5 + $0x140] sm:$0xf]
    %v168 = vld [vmem:[#allocation5 + $0x144] sm:$0xf]
    %v169 = vld [vmem:[#allocation5 + $0x148] sm:$0xf]
    %v170 = vld [vmem:[#allocation5 + $0x14c] sm:$0xf]
    %v171 = vld [vmem:[#allocation5 + $0x150] sm:$0xf]
    %v172 = vld [vmem:[#allocation5 + $0x154] sm:$0xf]
    %v173 = vld [vmem:[#allocation5 + $0x158] sm:$0xf]
    %v174 = vld [vmem:[#allocation5 + $0x15c] sm:$0xf]
    %v175 = vld [vmem:[#allocation5 + $0x160] sm:$0xf]
    %v176 = vld [vmem:[#allocation5 + $0x164] sm:$0xf]
    %v177 = vld [vmem:[#allocation5 + $0x168] sm:$0xf]
    %v178 = vld [vmem:[#allocation5 + $0x16c] sm:$0xf]
    %v179 = vld [vmem:[#allocation5 + $0x170] sm:$0xf]
    %v180 = vld [vmem:[#allocation5 + $0x174] sm:$0xf]
    %v181 = vld [vmem:[#allocation5 + $0x178] sm:$0xf]
    %v182 = vld [vmem:[#allocation5 + $0x17c] sm:$0xf]
    %v183 = vld [vmem:[#allocation5 + $0x180] sm:$0xf]
    %v184 = vld [vmem:[#allocation5 + $0x184] sm:$0xf]
    %v185 = vld [vmem:[#allocation5 + $0x188] sm:$0xf]
    %v186 = vld [vmem:[#allocation5 + $0x18c] sm:$0xf]
    %v187 = vld [vmem:[#allocation5 + $0x190] sm:$0xf]
    %v188 = vld [vmem:[#allocation5 + $0x194] sm:$0xf]
    %v189 = vld [vmem:[#allocation5 + $0x198] sm:$0xf]
    %v190 = vld [vmem:[#allocation5 + $0x19c] sm:$0xf]
    %v191 = vld [vmem:[#allocation5 + $0x1a0] sm:$0xf]
    %v192 = vld [vmem:[#allocation5 + $0x1a4] sm:$0xf]
    %v193 = vld [vmem:[#allocation5 + $0x1a8] sm:$0xf]
    %v194 = vld [vmem:[#allocation5 + $0x1ac] sm:$0xf]
    %v195 = vld [vmem:[#allocation5 + $0x1b0] sm:$0xf]
    %v196 = vld [vmem:[#allocation5 + $0x1b4] sm:$0xf]
    %v197 = vld [vmem:[#allocation5 + $0x1b8] sm:$0xf]
    %v198 = vld [vmem:[#allocation5 + $0x1bc] sm:$0xf]
    %v199 = vld [vmem:[#allocation5 + $0x1c0] sm:$0xf]
    %v200 = vld [vmem:[#allocation5 + $0x1c4] sm:$0xf]
    %v201 = vld [vmem:[#allocation5 + $0x1c8] sm:$0xf]
    %v202 = vld [vmem:[#allocation5 + $0x1cc] sm:$0xf]
    %v203 = vld [vmem:[#allocation5 + $0x1d0] sm:$0xf]
    %v204 = vld [vmem:[#allocation5 + $0x1d4] sm:$0xf]
    %v205 = vld [vmem:[#allocation5 + $0x1d8] sm:$0xf]
    %v206 = vld [vmem:[#allocation5 + $0x1dc] sm:$0xf]
    %v207 = vld [vmem:[#allocation5 + $0x1e0] sm:$0xf]
    %v208 = vld [vmem:[#allocation5 + $0x1e4] sm:$0xf]
    %v209 = vld [vmem:[#allocation5 + $0x1e8] sm:$0xf]
    %v210 = vld [vmem:[#allocation5 + $0x1ec] sm:$0xf]
    %v211 = vld [vmem:[#allocation5 + $0x1f0] sm:$0xf]
    %v212 = vld [vmem:[#allocation5 + $0x1f4] sm:$0xf]
    %v213 = vld [vmem:[#allocation5 + $0x1f8] sm:$0xf]
    %v214 = vld [vmem:[#allocation5 + $0x1fc] sm:$0xf]
    %v215 = vld [vmem:[%s2] sm:$0x1]
    %v217 = vlaneseq
    %v218 = vshrl.u32 %v217, 7
    %v219 = vsub.s32 0, %v218
    %v220 = vrot.slane %v215, %v219
    %v224 = vcombine.high %v85, %v85
    %v226 = vunpack.c.l.s4 1983009808
    %v227 = vunpack.c.0.s8 %v226
    %v228 = vlaneseq
    %v229 = vshrl.u32 %v228, 7
    %v230 = vsub.s32 %v227, %v229
    %v231 = vrot.slane %v85, %v230
    %v233 = vunpack.c.l.s4 1983009808
    %v234 = vunpack.c.0.s8 %v233
    %v235 = vlaneseq
    %v236 = vshrl.u32 %v235, 7
    %v237 = vsub.s32 %v234, %v236
    %v238 = vrot.slane %v224, %v237
    %v239 = vcombine.high %v231, %v231
    %v240 = vcombine.high %v238, %v238
    %v241 = vcombine.high %v86, %v86
    %v243 = vunpack.c.l.s4 1983009808
    %v244 = vunpack.c.0.s8 %v243
    %v245 = vlaneseq
    %v246 = vshrl.u32 %v245, 7
    %v247 = vsub.s32 %v244, %v246
    %v248 = vrot.slane %v86, %v247
    %v250 = vunpack.c.l.s4 1983009808
    %v251 = vunpack.c.0.s8 %v250
    %v252 = vlaneseq
    %v253 = vshrl.u32 %v252, 7
    %v254 = vsub.s32 %v251, %v253
    %v255 = vrot.slane %v241, %v254
    %v256 = vcombine.high %v248, %v248
    %v257 = vcombine.high %v255, %v255
    %v394 = vunpack.c.l.b16 %v87
    %v395 = vunpack.c.l.b16 %v88
    %v396 = vunpack.c.l.b16 %v89
    %v397 = vunpack.c.l.b16 %v90
    %v398 = vunpack.c.l.b16 %v91
    %v399 = vunpack.c.l.b16 %v92
    %v400 = vunpack.c.l.b16 %v93
    %v401 = vunpack.c.l.b16 %v94
    %v402 = vunpack.c.l.b16 %v95
    %v403 = vunpack.c.l.b16 %v96
    %v404 = vunpack.c.l.b16 %v97
    %v405 = vunpack.c.l.b16 %v98
    %v406 = vunpack.c.l.b16 %v99
    %v407 = vunpack.c.l.b16 %v100
    %v408 = vunpack.c.l.b16 %v101
    %v409 = vunpack.c.l.b16 %v102
    %v410 = vunpack.c.l.b16 %v103
    %v411 = vunpack.c.l.b16 %v104
    %v412 = vunpack.c.l.b16 %v105
    %v413 = vunpack.c.l.b16 %v106
    %v414 = vunpack.c.l.b16 %v107
    %v415 = vunpack.c.l.b16 %v108
    %v416 = vunpack.c.l.b16 %v109
    %v417 = vunpack.c.l.b16 %v110
    %v418 = vunpack.c.l.b16 %v111
    %v419 = vunpack.c.l.b16 %v112
    %v420 = vunpack.c.l.b16 %v113
    %v421 = vunpack.c.l.b16 %v114
    %v422 = vunpack.c.l.b16 %v115
    %v423 = vunpack.c.l.b16 %v116
    %v424 = vunpack.c.l.b16 %v117
    %v425 = vunpack.c.l.b16 %v118
    %v426 = vunpack.c.l.b16 %v119
    %v427 = vunpack.c.l.b16 %v120
    %v428 = vunpack.c.l.b16 %v121
    %v429 = vunpack.c.l.b16 %v122
    %v430 = vunpack.c.l.b16 %v123
    %v431 = vunpack.c.l.b16 %v124
    %v432 = vunpack.c.l.b16 %v125
    %v433 = vunpack.c.l.b16 %v126
    %v434 = vunpack.c.l.b16 %v127
    %v435 = vunpack.c.l.b16 %v128
    %v436 = vunpack.c.l.b16 %v129
    %v437 = vunpack.c.l.b16 %v130
    %v438 = vunpack.c.l.b16 %v131
    %v439 = vunpack.c.l.b16 %v132
    %v440 = vunpack.c.l.b16 %v133
    %v441 = vunpack.c.l.b16 %v134
    %v442 = vunpack.c.l.b16 %v135
    %v443 = vunpack.c.l.b16 %v136
    %v444 = vunpack.c.l.b16 %v137
    %v445 = vunpack.c.l.b16 %v138
    %v446 = vunpack.c.l.b16 %v139
    %v447 = vunpack.c.l.b16 %v140
    %v448 = vunpack.c.l.b16 %v141
    %v449 = vunpack.c.l.b16 %v142
    %v450 = vunpack.c.l.b16 %v143
    %v451 = vunpack.c.l.b16 %v144
    %v452 = vunpack.c.l.b16 %v145
    %v453 = vunpack.c.l.b16 %v146
    %v454 = vunpack.c.l.b16 %v147
    %v455 = vunpack.c.l.b16 %v148
    %v456 = vunpack.c.l.b16 %v149
    %v457 = vunpack.c.l.b16 %v150
    %v458 = vunpack.c.l.b16 %v151
    %v459 = vunpack.c.l.b16 %v152
    %v460 = vunpack.c.l.b16 %v153
    %v461 = vunpack.c.l.b16 %v154
    %v462 = vunpack.c.l.b16 %v155
    %v463 = vunpack.c.l.b16 %v156
    %v464 = vunpack.c.l.b16 %v157
    %v465 = vunpack.c.l.b16 %v158
    %v466 = vunpack.c.l.b16 %v159
    %v467 = vunpack.c.l.b16 %v160
    %v468 = vunpack.c.l.b16 %v161
    %v469 = vunpack.c.l.b16 %v162
    %v470 = vunpack.c.l.b16 %v163
    %v471 = vunpack.c.l.b16 %v164
    %v472 = vunpack.c.l.b16 %v165
    %v473 = vunpack.c.l.b16 %v166
    %v474 = vunpack.c.l.b16 %v167
    %v475 = vunpack.c.l.b16 %v168
    %v476 = vunpack.c.l.b16 %v169
    %v477 = vunpack.c.l.b16 %v170
    %v478 = vunpack.c.l.b16 %v171
    %v479 = vunpack.c.l.b16 %v172
    %v480 = vunpack.c.l.b16 %v173
    %v481 = vunpack.c.l.b16 %v174
    %v482 = vunpack.c.l.b16 %v175
    %v483 = vunpack.c.l.b16 %v176
    %v484 = vunpack.c.l.b16 %v177
    %v485 = vunpack.c.l.b16 %v178
    %v486 = vunpack.c.l.b16 %v179
    %v487 = vunpack.c.l.b16 %v180
    %v488 = vunpack.c.l.b16 %v181
    %v489 = vunpack.c.l.b16 %v182
    %v490 = vunpack.c.l.b16 %v183
    %v491 = vunpack.c.l.b16 %v184
    %v492 = vunpack.c.l.b16 %v185
    %v493 = vunpack.c.l.b16 %v186
    %v494 = vunpack.c.l.b16 %v187
    %v495 = vunpack.c.l.b16 %v188
    %v496 = vunpack.c.l.b16 %v189
    %v497 = vunpack.c.l.b16 %v190
    %v498 = vunpack.c.l.b16 %v191
    %v499 = vunpack.c.l.b16 %v192
    %v500 = vunpack.c.l.b16 %v193
    %v501 = vunpack.c.l.b16 %v194
    %v502 = vunpack.c.l.b16 %v195
    %v503 = vunpack.c.l.b16 %v196
    %v504 = vunpack.c.l.b16 %v197
    %v505 = vunpack.c.l.b16 %v198
    %v506 = vunpack.c.l.b16 %v199
    %v507 = vunpack.c.l.b16 %v200
    %v508 = vunpack.c.l.b16 %v201
    %v509 = vunpack.c.l.b16 %v202
    %v510 = vunpack.c.l.b16 %v203
    %v511 = vunpack.c.l.b16 %v204
    %v512 = vunpack.c.l.b16 %v205
    %v513 = vunpack.c.l.b16 %v206
    %v514 = vunpack.c.l.b16 %v207
    %v515 = vunpack.c.l.b16 %v208
    %v516 = vunpack.c.l.b16 %v209
    %v517 = vunpack.c.l.b16 %v210
    %v518 = vunpack.c.l.b16 %v211
    %v519 = vunpack.c.l.b16 %v212
    %v520 = vunpack.c.l.b16 %v213
    %v521 = vunpack.c.l.b16 %v214
    %v522 = vpack.c.b16 %v395, %v394
    %v523 = vpack.c.b16 %v397, %v396
    %v524 = vpack.c.b16 %v399, %v398
    %v525 = vpack.c.b16 %v401, %v400
    %v526 = vpack.c.b16 %v403, %v402
    %v527 = vpack.c.b16 %v405, %v404
    %v528 = vpack.c.b16 %v407, %v406
    %v529 = vpack.c.b16 %v409, %v408
    %v530 = vpack.c.b16 %v411, %v410
    %v531 = vpack.c.b16 %v413, %v412
    %v532 = vpack.c.b16 %v415, %v414
    %v533 = vpack.c.b16 %v417, %v416
    %v534 = vpack.c.b16 %v419, %v418
    %v535 = vpack.c.b16 %v421, %v420
    %v536 = vpack.c.b16 %v423, %v422
    %v537 = vpack.c.b16 %v425, %v424
    %v538 = vpack.c.b16 %v427, %v426
    %v539 = vpack.c.b16 %v429, %v428
    %v540 = vpack.c.b16 %v431, %v430
    %v541 = vpack.c.b16 %v433, %v432
    %v542 = vpack.c.b16 %v435, %v434
    %v543 = vpack.c.b16 %v437, %v436
    %v544 = vpack.c.b16 %v439, %v438
    %v545 = vpack.c.b16 %v441, %v440
    %v546 = vpack.c.b16 %v443, %v442
    %v547 = vpack.c.b16 %v445, %v444
    %v548 = vpack.c.b16 %v447, %v446
    %v549 = vpack.c.b16 %v449, %v448
    %v550 = vpack.c.b16 %v451, %v450
    %v551 = vpack.c.b16 %v453, %v452
    %v552 = vpack.c.b16 %v455, %v454
    %v553 = vpack.c.b16 %v457, %v456
    %v554 = vpack.c.b16 %v459, %v458
    %v555 = vpack.c.b16 %v461, %v460
    %v556 = vpack.c.b16 %v463, %v462
    %v557 = vpack.c.b16 %v465, %v464
    %v558 = vpack.c.b16 %v467, %v466
    %v559 = vpack.c.b16 %v469, %v468
    %v560 = vpack.c.b16 %v471, %v470
    %v561 = vpack.c.b16 %v473, %v472
    %v562 = vpack.c.b16 %v475, %v474
    %v563 = vpack.c.b16 %v477, %v476
    %v564 = vpack.c.b16 %v479, %v478
    %v565 = vpack.c.b16 %v481, %v480
    %v566 = vpack.c.b16 %v483, %v482
    %v567 = vpack.c.b16 %v485, %v484
    %v568 = vpack.c.b16 %v487, %v486
    %v569 = vpack.c.b16 %v489, %v488
    %v570 = vpack.c.b16 %v491, %v490
    %v571 = vpack.c.b16 %v493, %v492
    %v572 = vpack.c.b16 %v495, %v494
    %v573 = vpack.c.b16 %v497, %v496
    %v574 = vpack.c.b16 %v499, %v498
    %v575 = vpack.c.b16 %v501, %v500
    %v576 = vpack.c.b16 %v503, %v502
    %v577 = vpack.c.b16 %v505, %v504
    %v578 = vpack.c.b16 %v507, %v506
    %v579 = vpack.c.b16 %v509, %v508
    %v580 = vpack.c.b16 %v511, %v510
    %v581 = vpack.c.b16 %v513, %v512
    %v582 = vpack.c.b16 %v515, %v514
    %v583 = vpack.c.b16 %v517, %v516
    %v584 = vpack.c.b16 %v519, %v518
    %v585 = vpack.c.b16 %v521, %v520
    %650 = vmatprep.subr.bf16.mxu0 0
    %651 = vmatpush1.bf16.msra.mxu0 %v529
    %652 = vmatprep.subr.bf16.mxu0 0
    %653 = vmatpush1.bf16.msra.mxu0 %v528
    %654 = vmatprep.subr.bf16.mxu0 0
    %655 = vmatpush1.bf16.msra.mxu0 %v527
    %656 = vmatprep.subr.bf16.mxu0 0
    %657 = vmatpush1.bf16.msra.mxu0 %v526
    %658 = vmatprep.subr.bf16.mxu0 0
    %659 = vmatpush1.bf16.msra.mxu0 %v525
    %660 = vmatprep.subr.bf16.mxu0 0
    %661 = vmatpush1.bf16.msra.mxu0 %v524
    %662 = vmatprep.subr.bf16.mxu0 0
    %663 = vmatpush1.bf16.msra.mxu0 %v523
    %664 = vmatprep.subr.bf16.mxu0 0
    %665 = vmatpush1.bf16.msra.mxu0 %v522
    %666 = vmatprep.subr.bf16.mxu0 0
    %667 = vmatpush2.bf16.msra.mxu0 %v537
    %668 = vmatprep.subr.bf16.mxu0 0
    %669 = vmatpush2.bf16.msra.mxu0 %v536
    %670 = vmatprep.subr.bf16.mxu0 0
    %671 = vmatpush2.bf16.msra.mxu0 %v535
    %672 = vmatprep.subr.bf16.mxu0 0
    %673 = vmatpush2.bf16.msra.mxu0 %v534
    %674 = vmatprep.subr.bf16.mxu0 0
    %675 = vmatpush2.bf16.msra.mxu0 %v533
    %676 = vmatprep.subr.bf16.mxu0 0
    %677 = vmatpush2.bf16.msra.mxu0 %v532
    %678 = vmatprep.subr.bf16.mxu0 0
    %679 = vmatpush2.bf16.msra.mxu0 %v531
    %680 = vmatprep.subr.bf16.mxu0 0
    %681 = vmatpush2.bf16.msra.mxu0 %v530
    %682 = vmatprep.mubr.bf16.mxu0 %v239
    %683 = vmatmul.mubr.bf16.gmra.mxu0 %v231
    %v684 = vpop.f32.mrf.mxu0
    %v685 = vadd.f32 %v220, %v684
    %v686 = vpop.f32.mrf.mxu0
    %v687 = vpop.f32.mrf.mxu0
    %v688 = vpop.f32.mrf.mxu0
    %689 = vdwg.mxu0
    %690 = vmatprep.subr.bf16.mxu0 0
    %691 = vmatpush1.bf16.msra.mxu0 %v545
    %692 = vmatprep.subr.bf16.mxu0 0
    %693 = vmatpush1.bf16.msra.mxu0 %v544
    %694 = vmatprep.subr.bf16.mxu0 0
    %695 = vmatpush1.bf16.msra.mxu0 %v543
    %696 = vmatprep.subr.bf16.mxu0 0
    %697 = vmatpush1.bf16.msra.mxu0 %v542
    %698 = vmatprep.subr.bf16.mxu0 0
    %699 = vmatpush1.bf16.msra.mxu0 %v541
    %700 = vmatprep.subr.bf16.mxu0 0
    %701 = vmatpush1.bf16.msra.mxu0 %v540
    %702 = vmatprep.subr.bf16.mxu0 0
    %703 = vmatpush1.bf16.msra.mxu0 %v539
    %704 = vmatprep.subr.bf16.mxu0 0
    %705 = vmatpush1.bf16.msra.mxu0 %v538
    %706 = vmatprep.subr.bf16.mxu0 0
    %707 = vmatpush2.bf16.msra.mxu0 %v553
    %708 = vmatprep.subr.bf16.mxu0 0
    %709 = vmatpush2.bf16.msra.mxu0 %v552
    %710 = vmatprep.subr.bf16.mxu0 0
    %711 = vmatpush2.bf16.msra.mxu0 %v551
    %712 = vmatprep.subr.bf16.mxu0 0
    %713 = vmatpush2.bf16.msra.mxu0 %v550
    %714 = vmatprep.subr.bf16.mxu0 0
    %715 = vmatpush2.bf16.msra.mxu0 %v549
    %716 = vmatprep.subr.bf16.mxu0 0
    %717 = vmatpush2.bf16.msra.mxu0 %v548
    %718 = vmatprep.subr.bf16.mxu0 0
    %719 = vmatpush2.bf16.msra.mxu0 %v547
    %720 = vmatprep.subr.bf16.mxu0 0
    %721 = vmatpush2.bf16.msra.mxu0 %v546
    %722 = vmatprep.mubr.bf16.mxu0 %v240
    %723 = vmatmul.mubr.bf16.gmra.mxu0 %v238
    %v724 = vpop.f32.mrf.mxu0
    %v725 = vadd.f32 %v685, %v724
    %v726 = vpop.f32.mrf.mxu0
    %v727 = vpop.f32.mrf.mxu0
    %v728 = vpop.f32.mrf.mxu0
    %729 = vdwg.mxu0
    %730 = vmatprep.subr.bf16.mxu0 0
    %731 = vmatpush1.bf16.msra.mxu0 %v561
    %732 = vmatprep.subr.bf16.mxu0 0
    %733 = vmatpush1.bf16.msra.mxu0 %v560
    %734 = vmatprep.subr.bf16.mxu0 0
    %735 = vmatpush1.bf16.msra.mxu0 %v559
    %736 = vmatprep.subr.bf16.mxu0 0
    %737 = vmatpush1.bf16.msra.mxu0 %v558
    %738 = vmatprep.subr.bf16.mxu0 0
    %739 = vmatpush1.bf16.msra.mxu0 %v557
    %740 = vmatprep.subr.bf16.mxu0 0
    %741 = vmatpush1.bf16.msra.mxu0 %v556
    %742 = vmatprep.subr.bf16.mxu0 0
    %743 = vmatpush1.bf16.msra.mxu0 %v555
    %744 = vmatprep.subr.bf16.mxu0 0
    %745 = vmatpush1.bf16.msra.mxu0 %v554
    %746 = vmatprep.subr.bf16.mxu0 0
    %747 = vmatpush2.bf16.msra.mxu0 %v569
    %748 = vmatprep.subr.bf16.mxu0 0
    %749 = vmatpush2.bf16.msra.mxu0 %v568
    %750 = vmatprep.subr.bf16.mxu0 0
    %751 = vmatpush2.bf16.msra.mxu0 %v567
    %752 = vmatprep.subr.bf16.mxu0 0
    %753 = vmatpush2.bf16.msra.mxu0 %v566
    %754 = vmatprep.subr.bf16.mxu0 0
    %755 = vmatpush2.bf16.msra.mxu0 %v565
    %756 = vmatprep.subr.bf16.mxu0 0
    %757 = vmatpush2.bf16.msra.mxu0 %v564
    %758 = vmatprep.subr.bf16.mxu0 0
    %759 = vmatpush2.bf16.msra.mxu0 %v563
    %760 = vmatprep.subr.bf16.mxu0 0
    %761 = vmatpush2.bf16.msra.mxu0 %v562
    %762 = vmatprep.mubr.bf16.mxu0 %v256
    %763 = vmatmul.mubr.bf16.gmra.mxu0 %v248
    %v764 = vpop.f32.mrf.mxu0
    %v765 = vadd.f32 %v725, %v764
    %v766 = vpop.f32.mrf.mxu0
    %v767 = vpop.f32.mrf.mxu0
    %v768 = vpop.f32.mrf.mxu0
    %769 = vdwg.mxu0
    %770 = vmatprep.subr.bf16.mxu0 0
    %771 = vmatpush1.bf16.msra.mxu0 %v577
    %772 = vmatprep.subr.bf16.mxu0 0
    %773 = vmatpush1.bf16.msra.mxu0 %v576
    %774 = vmatprep.subr.bf16.mxu0 0
    %775 = vmatpush1.bf16.msra.mxu0 %v575
    %776 = vmatprep.subr.bf16.mxu0 0
    %777 = vmatpush1.bf16.msra.mxu0 %v574
    %778 = vmatprep.subr.bf16.mxu0 0
    %779 = vmatpush1.bf16.msra.mxu0 %v573
    %780 = vmatprep.subr.bf16.mxu0 0
    %781 = vmatpush1.bf16.msra.mxu0 %v572
    %782 = vmatprep.subr.bf16.mxu0 0
    %783 = vmatpush1.bf16.msra.mxu0 %v571
    %784 = vmatprep.subr.bf16.mxu0 0
    %785 = vmatpush1.bf16.msra.mxu0 %v570
    %786 = vmatprep.subr.bf16.mxu0 0
    %787 = vmatpush2.bf16.msra.mxu0 %v585
    %788 = vmatprep.subr.bf16.mxu0 0
    %789 = vmatpush2.bf16.msra.mxu0 %v584
    %790 = vmatprep.subr.bf16.mxu0 0
    %791 = vmatpush2.bf16.msra.mxu0 %v583
    %792 = vmatprep.subr.bf16.mxu0 0
    %793 = vmatpush2.bf16.msra.mxu0 %v582
    %794 = vmatprep.subr.bf16.mxu0 0
    %795 = vmatpush2.bf16.msra.mxu0 %v581
    %796 = vmatprep.subr.bf16.mxu0 0
    %797 = vmatpush2.bf16.msra.mxu0 %v580
    %798 = vmatprep.subr.bf16.mxu0 0
    %799 = vmatpush2.bf16.msra.mxu0 %v579
    %800 = vmatprep.subr.bf16.mxu0 0
    %801 = vmatpush2.bf16.msra.mxu0 %v578
    %802 = vmatprep.mubr.bf16.mxu0 %v257
    %803 = vmatmul.mubr.bf16.gmra.mxu0 %v255
    %v804 = vpop.f32.mrf.mxu0
    %v805 = vadd.f32 %v765, %v804
    %v806 = vpop.f32.mrf.mxu0
    %v807 = vpop.f32.mrf.mxu0
    %v808 = vpop.f32.mrf.mxu0
    %809 = vdwg.mxu0
    %v810 = vmax.f32 %v805, 0.0
    %v811 = vpack.c.bf16 %v810, %v810
    %v812 = vld [vmem:[#allocation7] sm:$0xff]
    %v813 = vld [vmem:[#allocation7 + $0x8] sm:$0xff]
    %v814 = vld [vmem:[#allocation7 + $0x10] sm:$0xff]
    %v815 = vld [vmem:[#allocation7 + $0x18] sm:$0xff]
    %v816 = vld [vmem:[#allocation7 + $0x20] sm:$0xff]
    %v817 = vld [vmem:[#allocation7 + $0x28] sm:$0xff]
    %v818 = vld [vmem:[#allocation7 + $0x30] sm:$0xff]
    %v819 = vld [vmem:[#allocation7 + $0x38] sm:$0xff]
    %v820 = vld [vmem:[#allocation7 + $0x40] sm:$0xff]
    %v821 = vld [vmem:[#allocation7 + $0x48] sm:$0xff]
    %v822 = vld [vmem:[#allocation7 + $0x50] sm:$0xff]
    %v823 = vld [vmem:[#allocation7 + $0x58] sm:$0xff]
    %v824 = vld [vmem:[#allocation7 + $0x60] sm:$0xff]
    %v825 = vld [vmem:[#allocation7 + $0x68] sm:$0xff]
    %v826 = vld [vmem:[#allocation7 + $0x70] sm:$0xff]
    %v827 = vld [vmem:[#allocation7 + $0x78] sm:$0xff]
    %v828 = vld [vmem:[#allocation8] sm:$0xff]
    %v829 = vld [vmem:[#allocation8 + $0x8] sm:$0xff]
    %v830 = vld [vmem:[#allocation8 + $0x10] sm:$0xff]
    %v831 = vld [vmem:[#allocation8 + $0x18] sm:$0xff]
    %v832 = vld [vmem:[#allocation8 + $0x20] sm:$0xff]
    %v833 = vld [vmem:[#allocation8 + $0x28] sm:$0xff]
    %v834 = vld [vmem:[#allocation8 + $0x30] sm:$0xff]
    %v835 = vld [vmem:[#allocation8 + $0x38] sm:$0xff]
    %v836 = vld [vmem:[#allocation8 + $0x40] sm:$0xff]
    %v837 = vld [vmem:[#allocation8 + $0x48] sm:$0xff]
    %v838 = vld [vmem:[#allocation8 + $0x50] sm:$0xff]
    %v839 = vld [vmem:[#allocation8 + $0x58] sm:$0xff]
    %v840 = vld [vmem:[#allocation8 + $0x60] sm:$0xff]
    %v841 = vld [vmem:[#allocation8 + $0x68] sm:$0xff]
    %v842 = vld [vmem:[#allocation8 + $0x70] sm:$0xff]
    %v843 = vld [vmem:[#allocation8 + $0x78] sm:$0xff]
    %v845 = vrot.slane %v811, 1
    %v863 = vunpack.c.l.b16 %v828
    %v864 = vunpack.c.h.b16 %v828
    %v865 = vunpack.c.l.b16 %v829
    %v866 = vunpack.c.h.b16 %v829
    %v867 = vunpack.c.l.b16 %v830
    %v868 = vunpack.c.h.b16 %v830
    %v869 = vunpack.c.l.b16 %v831
    %v870 = vunpack.c.h.b16 %v831
    %v871 = vunpack.c.l.b16 %v832
    %v872 = vunpack.c.h.b16 %v832
    %v873 = vunpack.c.l.b16 %v833
    %v874 = vunpack.c.h.b16 %v833
    %v875 = vunpack.c.l.b16 %v834
    %v876 = vunpack.c.h.b16 %v834
    %v877 = vunpack.c.l.b16 %v835
    %v878 = vunpack.c.h.b16 %v835
    %v879 = vunpack.c.l.b16 %v836
    %v880 = vunpack.c.h.b16 %v836
    %v881 = vunpack.c.l.b16 %v837
    %v882 = vunpack.c.h.b16 %v837
    %v883 = vunpack.c.l.b16 %v838
    %v884 = vunpack.c.h.b16 %v838
    %v885 = vunpack.c.l.b16 %v839
    %v886 = vunpack.c.h.b16 %v839
    %v887 = vunpack.c.l.b16 %v840
    %v888 = vunpack.c.h.b16 %v840
    %v889 = vunpack.c.l.b16 %v841
    %v890 = vunpack.c.h.b16 %v841
    %v891 = vunpack.c.l.b16 %v842
    %v892 = vunpack.c.h.b16 %v842
    %v893 = vunpack.c.l.b16 %v843
    %v894 = vunpack.c.h.b16 %v843
    %v895 = vpack.c.b16 %v865, %v863
    %v896 = vpack.c.b16 %v866, %v864
    %v897 = vpack.c.b16 %v869, %v867
    %v898 = vpack.c.b16 %v870, %v868
    %v899 = vpack.c.b16 %v873, %v871
    %v900 = vpack.c.b16 %v874, %v872
    %v901 = vpack.c.b16 %v877, %v875
    %v902 = vpack.c.b16 %v878, %v876
    %v903 = vpack.c.b16 %v881, %v879
    %v904 = vpack.c.b16 %v882, %v880
    %v905 = vpack.c.b16 %v885, %v883
    %v906 = vpack.c.b16 %v886, %v884
    %v907 = vpack.c.b16 %v889, %v887
    %v908 = vpack.c.b16 %v890, %v888
    %v909 = vpack.c.b16 %v893, %v891
    %v910 = vpack.c.b16 %v894, %v892
    %927 = vmatprep.subr.bf16.mxu0 %v910
    %928 = vmatpush1.bf16.msra.mxu0 %v909
    %929 = vmatprep.subr.bf16.mxu0 %v908
    %930 = vmatpush1.bf16.msra.mxu0 %v907
    %931 = vmatprep.subr.bf16.mxu0 %v906
    %932 = vmatpush1.bf16.msra.mxu0 %v905
    %933 = vmatprep.subr.bf16.mxu0 %v904
    %934 = vmatpush1.bf16.msra.mxu0 %v903
    %935 = vmatprep.subr.bf16.mxu0 %v902
    %936 = vmatpush1.bf16.msra.mxu0 %v901
    %937 = vmatprep.subr.bf16.mxu0 %v900
    %938 = vmatpush1.bf16.msra.mxu0 %v899
    %939 = vmatprep.subr.bf16.mxu0 %v898
    %940 = vmatpush1.bf16.msra.mxu0 %v897
    %941 = vmatprep.subr.bf16.mxu0 %v896
    %942 = vmatpush1.bf16.msra.mxu0 %v895
    %943 = vmatprep.subr.bf16.mxu0 0
    %944 = vmatpush2.bf16.msra.mxu0 0
    %945 = vmatprep.subr.bf16.mxu0 0
    %946 = vmatpush2.bf16.msra.mxu0 0
    %947 = vmatprep.subr.bf16.mxu0 0
    %948 = vmatpush2.bf16.msra.mxu0 0
    %949 = vmatprep.subr.bf16.mxu0 0
    %950 = vmatpush2.bf16.msra.mxu0 0
    %951 = vmatprep.subr.bf16.mxu0 0
    %952 = vmatpush2.bf16.msra.mxu0 0
    %953 = vmatprep.subr.bf16.mxu0 0
    %954 = vmatpush2.bf16.msra.mxu0 0
    %955 = vmatprep.subr.bf16.mxu0 0
    %956 = vmatpush2.bf16.msra.mxu0 0
    %957 = vmatprep.subr.bf16.mxu0 0
    %958 = vmatpush2.bf16.msra.mxu0 0
    %959 = vmatprep.mubr.bf16.mxu0 0
    %960 = vmatmul.mubr.bf16.gmra.mxu0 %v845
    %v961 = vpop.f32.mrf.mxu0
    %v962 = vadd.f32 0.0, %v961
    %v963 = vpop.f32.mrf.mxu0
    %v964 = vadd.f32 0.0, %v963
    %v965 = vpop.f32.mrf.mxu0
    %v966 = vpop.f32.mrf.mxu0
    %967 = vdwg.mxu0
    %v984 = vunpack.c.l.b16 %v812
    %v985 = vunpack.c.h.b16 %v812
    %v986 = vunpack.c.l.b16 %v813
    %v987 = vunpack.c.h.b16 %v813
    %v988 = vunpack.c.l.b16 %v814
    %v989 = vunpack.c.h.b16 %v814
    %v990 = vunpack.c.l.b16 %v815
    %v991 = vunpack.c.h.b16 %v815
    %v992 = vunpack.c.l.b16 %v816
    %v993 = vunpack.c.h.b16 %v816
    %v994 = vunpack.c.l.b16 %v817
    %v995 = vunpack.c.h.b16 %v817
    %v996 = vunpack.c.l.b16 %v818
    %v997 = vunpack.c.h.b16 %v818
    %v998 = vunpack.c.l.b16 %v819
    %v999 = vunpack.c.h.b16 %v819
    %v1000 = vunpack.c.l.b16 %v820
    %v1001 = vunpack.c.h.b16 %v820
    %v1002 = vunpack.c.l.b16 %v821
    %v1003 = vunpack.c.h.b16 %v821
    %v1004 = vunpack.c.l.b16 %v822
    %v1005 = vunpack.c.h.b16 %v822
    %v1006 = vunpack.c.l.b16 %v823
    %v1007 = vunpack.c.h.b16 %v823
    %v1008 = vunpack.c.l.b16 %v824
    %v1009 = vunpack.c.h.b16 %v824
    %v1010 = vunpack.c.l.b16 %v825
    %v1011 = vunpack.c.h.b16 %v825
    %v1012 = vunpack.c.l.b16 %v826
    %v1013 = vunpack.c.h.b16 %v826
    %v1014 = vunpack.c.l.b16 %v827
    %v1015 = vunpack.c.h.b16 %v827
    %v1016 = vpack.c.b16 %v986, %v984
    %v1017 = vpack.c.b16 %v987, %v985
    %v1018 = vpack.c.b16 %v990, %v988
    %v1019 = vpack.c.b16 %v991, %v989
    %v1020 = vpack.c.b16 %v994, %v992
    %v1021 = vpack.c.b16 %v995, %v993
    %v1022 = vpack.c.b16 %v998, %v996
    %v1023 = vpack.c.b16 %v999, %v997
    %v1024 = vpack.c.b16 %v1002, %v1000
    %v1025 = vpack.c.b16 %v1003, %v1001
    %v1026 = vpack.c.b16 %v1006, %v1004
    %v1027 = vpack.c.b16 %v1007, %v1005
    %v1028 = vpack.c.b16 %v1010, %v1008
    %v1029 = vpack.c.b16 %v1011, %v1009
    %v1030 = vpack.c.b16 %v1014, %v1012
    %v1031 = vpack.c.b16 %v1015, %v1013
    %1048 = vmatprep.subr.bf16.mxu0 %v1031
    %1049 = vmatpush1.bf16.msra.mxu0 %v1030
    %1050 = vmatprep.subr.bf16.mxu0 %v1029
    %1051 = vmatpush1.bf16.msra.mxu0 %v1028
    %1052 = vmatprep.subr.bf16.mxu0 %v1027
    %1053 = vmatpush1.bf16.msra.mxu0 %v1026
    %1054 = vmatprep.subr.bf16.mxu0 %v1025
    %1055 = vmatpush1.bf16.msra.mxu0 %v1024
    %1056 = vmatprep.subr.bf16.mxu0 %v1023
    %1057 = vmatpush1.bf16.msra.mxu0 %v1022
    %1058 = vmatprep.subr.bf16.mxu0 %v1021
    %1059 = vmatpush1.bf16.msra.mxu0 %v1020
    %1060 = vmatprep.subr.bf16.mxu0 %v1019
    %1061 = vmatpush1.bf16.msra.mxu0 %v1018
    %1062 = vmatprep.subr.bf16.mxu0 %v1017
    %1063 = vmatpush1.bf16.msra.mxu0 %v1016
    %1064 = vmatprep.subr.bf16.mxu0 0
    %1065 = vmatpush2.bf16.msra.mxu0 0
    %1066 = vmatprep.subr.bf16.mxu0 0
    %1067 = vmatpush2.bf16.msra.mxu0 0
    %1068 = vmatprep.subr.bf16.mxu0 0
    %1069 = vmatpush2.bf16.msra.mxu0 0
    %1070 = vmatprep.subr.bf16.mxu0 0
    %1071 = vmatpush2.bf16.msra.mxu0 0
    %1072 = vmatprep.subr.bf16.mxu0 0
    %1073 = vmatpush2.bf16.msra.mxu0 0
    %1074 = vmatprep.subr.bf16.mxu0 0
    %1075 = vmatpush2.bf16.msra.mxu0 0
    %1076 = vmatprep.subr.bf16.mxu0 0
    %1077 = vmatpush2.bf16.msra.mxu0 0
    %1078 = vmatprep.subr.bf16.mxu0 0
    %1079 = vmatpush2.bf16.msra.mxu0 0
    %1080 = vmatprep.mubr.bf16.mxu0 0
    %1081 = vmatmul.mubr.bf16.gmra.mxu0 %v811
    %v1082 = vpop.f32.mrf.mxu0
    %v1083 = vadd.f32 %v962, %v1082
    %v1084 = vpop.f32.mrf.mxu0
    %v1085 = vadd.f32 %v964, %v1084
    %v1086 = vpop.f32.mrf.mxu0
    %v1087 = vpop.f32.mrf.mxu0
    %1088 = vdwg.mxu0
    %v1089 = vld [vmem:[%s5] sm:$0x3]
    %v1091 = vlaneseq
    %v1092 = vshrl.u32 %v1091, 7
    %v1093 = vsub.s32 0, %v1092
    %v1094 = vrot.slane %v1089, %v1093
    %v1095 = vlaneseq
    %v1096 = vshrl.u32 %v1095, 7
    %v1097 = vsub.s32 1, %v1096
    %v1098 = vrot.slane %v1089, %v1097
    %v1101 = vadd.f32 %v1083, %v1094
    %v1102 = vadd.f32 %v1085, %v1098
    %v1103 = vmax.f32 %v1101, 0.0
    %v1104 = vmax.f32 %v1102, 0.0
    %v1105 = vld [vmem:[%s6] sm:$0x3]
    %v1107 = vlaneseq
    %v1108 = vshrl.u32 %v1107, 7
    %v1109 = vsub.s32 0, %v1108
    %v1110 = vrot.slane %v1105, %v1109
    %v1111 = vlaneseq
    %v1112 = vshrl.u32 %v1111, 7
    %v1113 = vsub.s32 1, %v1112
    %v1114 = vrot.slane %v1105, %v1113
    %v1117 = vmul.f32 %v1103, %v1110
    %v1118 = vmul.f32 %v1104, %v1114
    %vm1119 = vcmask 1041408
    %v1120 = vsel %vm1119, %v1117, 0.0
    %v1121 = vsel %vm1119, %v1118, 0.0
    %v1122 = vadd.f32 %v1120, %v1121
    %1123 = vadd.xlane.f32.xlu0 %v1122
    %v1124 = vpop.xlane.xlu0 %1123
    %v1125 = vld [vmem:[#allocation2] sm:$0x1]
    %v1127 = vlaneseq
    %v1128 = vshrl.u32 %v1127, 7
    %v1129 = vsub.s32 0, %v1128
    %v1130 = vrot.slane %v1125, %v1129
    %v1132 = vadd.f32 %v1124, %v1130
    %v1133 = vxor.u32 %v1132, 2147483648
    %v1134 = vmul.f32 %v1133, 1.442695
    %v1135 = vpow.pop %v1134
    %v1136 = vadd.f32 %v1135, 1.0
    %v1137 = vrcp.pop %v1136
    %v1138 = vmul.f32 1.0, %v1137
    %vm1139 = vcmask 1024
    %1140 = vst.msk [vmem:[%s8] sm:$0x3] %vm1139, %v1138
    // Predicated region
    $region50: #{tpu_custom_call.1} parent=1 // pred_check
      _
    $region51: #{tpu_custom_call.1} parent=1 // pred_check_branch
      %1142 = sbr.rel (0) target = $region53
    $region52: #{tpu_custom_call.1} parent=1 // pred_region
      _
    $region53: #{tpu_custom_call.1} parent=1 // pred_fallthru
      _
    // Predicated region
    $region54: #{tpu_custom_call.1} parent=1 // pred_check
      _
    $region55: #{tpu_custom_call.1} parent=1 // pred_check_branch
      %1144 = sbr.rel (0) target = $region57
    $region56: #{tpu_custom_call.1} parent=1 // pred_region
      _
    $region57: #{tpu_custom_call.1} parent=1 // pred_fallthru
      _
    %1145 = vsyncpa [#allocation4], 1
    %1146 = vsyncpa [#allocation6], 1
    %1147 = vsyncpa [#allocation9], 1

</llo_original>
